<compile_context>
chip_gen: v6e
topology: v6e:2x2x1
jax: 0.10.0
libtpu: 0.0.40
codegen_flags: <defaults>
</compile_context>

<pallas_src>
import random

import jax
import jax.numpy as jnp
from jax.experimental import pallas as pl
from jax.experimental.pallas import tpu as pltpu

MARGIN = 0.5  # TripletLoss_self(margin=0.5) is hard-coded inside the PyTorch module

_LANE = 128
_SUBLANE = 8


def _round_up(x, m):
    return (x + m - 1) // m * m


def _cdiv(a, b):
    return (a + b - 1) // b


def _vmem_capacity_bytes():
    """Per-chip VMEM capacity; conservative (v7x per-core) fallback."""
    try:
        cap = getattr(pltpu.get_tpu_info(), "vmem_capacity_bytes", None)
        if cap:
            return int(cap)
    except Exception:
        pass
    return 64 * 1024 * 1024


def _choose_tiling(B, D, itemsize, vmem_budget):
    """Pick (tb, num_tiles, b_pad, per_tile_vmem_footprint_bytes)."""
    d_lane = _round_up(max(D, 1), _LANE)  # lane-padded width once in VMEM
    # Per-row VMEM bytes: 2 pipeline buffers x (3 feature streams in native
    # dtype + lane-padded label-term & output columns) + ~6 f32 intermediates
    # (a, p, q casts and the d1/d2 difference/square temporaries).
    per_row = 2 * (3 * d_lane * itemsize + 2 * _LANE * 4) + 6 * d_lane * 4
    tb_cap = max(_SUBLANE, min(512, (vmem_budget // per_row) // _SUBLANE * _SUBLANE))

    b8 = _round_up(max(B, 1), _SUBLANE)
    # Prefer >= 4 grid steps (DMA/compute overlap) when the batch allows it,
    # then re-derive num_tiles so batch padding waste stays < tb (instead of
    # padding all the way up to a huge tile).
    min_tiles = min(4, b8 // _SUBLANE)
    num_tiles = max(min_tiles, _cdiv(b8, tb_cap))
    tb = min(tb_cap, _round_up(_cdiv(b8, num_tiles), _SUBLANE))
    num_tiles = _cdiv(b8, tb)
    b_pad = num_tiles * tb
    return tb, num_tiles, b_pad, tb * per_row


def _adaptive_triplet_kernel(a_ref, p_ref, q_ref, lab_ref, out_ref):
    """One independent batch tile of the adaptive triplet loss.

    a_ref/p_ref/q_ref: (TB, D) anchor / sampled-row-1 / sampled-row-2 tiles in
        their native dtype (cast to f32 here).
    lab_ref: (TB, 2) f32 precomputed label terms: col0 = sign (+1 if
        L1(la,l1) >= L1(la,l2) else -1), col1 = sign * MARGIN * (|la-l1|^2 - |la-l2|^2).
    out_ref: (TB, 1) f32 per-row losses (summed outside the kernel).
    """
    a = a_ref[...].astype(jnp.float32)
    p = p_ref[...].astype(jnp.float32)   # sampled row 1 (index1)
    q = q_ref[...].astype(jnp.float32)   # sampled row 2 (index2)

    d1 = a - p
    d2 = a - q
    dist_a1 = jnp.sum(d1 * d1, axis=1, keepdims=True)   # (TB, 1)
    dist_a2 = jnp.sum(d2 * d2, axis=1, keepdims=True)

    sign = lab_ref[:, 0:1]
    bias = lab_ref[:, 1:2]
    # sign == +1  ->  near = sample2, far = sample1:
    #   loss = relu(dist_a2 - dist_a1 + m*(lsq1 - lsq2))
    # sign == -1 flips the whole term (roles swap).  relu makes the
    # `if loss >= 0` check in the PyTorch module vacuous.
    out_ref[...] = jnp.maximum(sign * (dist_a2 - dist_a1) + bias, 0.0)


def adaptive_triplet_loss(minibatch_features, label, idx1, idx2):
    """Pallas implementation of AdapitiveTripletLoss.forward.

    idx1, idx2: int arrays of shape (B,) — the host-side random.sample picks
    (already rejection-sampled so that idx1[i] != i, idx2[i] != i, idx1 != idx2).
    """
    feats = jnp.asarray(minibatch_features)           # native dtype, un-padded
    B, D = feats.shape
    lab = jnp.asarray(label, jnp.float32)
    idx1 = jnp.asarray(idx1, jnp.int32)
    idx2 = jnp.asarray(idx2, jnp.int32)

    # ---- label-side terms, computed by XLA (B x L is tiny) -----------------
    ld1 = lab - lab[idx1]
    ld2 = lab - lab[idx2]
    l1_abs = jnp.sum(jnp.abs(ld1), axis=1)            # L1Loss(reduction='sum')
    l2_abs = jnp.sum(jnp.abs(ld2), axis=1)
    l1_sq = jnp.sum(ld1 * ld1, axis=1)                # calc_euclidean on labels
    l2_sq = jnp.sum(ld2 * ld2, axis=1)
    sign = jnp.where(l1_abs >= l2_abs, 1.0, -1.0).astype(jnp.float32)
    bias = sign * MARGIN * (l1_sq - l2_sq)
    lab_terms = jnp.stack([sign, bias], axis=1)       # (B, 2) f32

    # ---- tiling / VMEM accounting ------------------------------------------
    itemsize = jnp.dtype(feats.dtype).itemsize
    vmem_cap = _vmem_capacity_bytes()
    tb, num_tiles, b_pad, footprint = _choose_tiling(B, D, itemsize, vmem_cap // 4)
    vmem_limit = int(min(max(vmem_cap // 2, footprint + (2 << 20)),
                         vmem_cap * 7 // 8))

    # Pad the batch to a multiple of tb.  Padded rows get sign == bias == 0,
    # so they contribute exactly zero loss regardless of the gathered rows.
    pad = b_pad - B
    feats_p = jnp.pad(feats, ((0, pad), (0, 0)))
    lab_p = jnp.pad(lab_terms, ((0, pad), (0, 0)))
    idx1_p = jnp.pad(idx1, (0, pad))                  # pad index 0: any valid row
    idx2_p = jnp.pad(idx2, (0, pad))

    # Sample-row gathers stay on the XLA side, but on un-padded native-dtype
    # rows, which is the cheap option for small rows.
    # TODO(synk): for wide rows (D*itemsize >~ 2 KiB) move this gather into the
    # kernel (scalar-prefetched indices + memory_space=pl.ANY feature ref +
    # manually double-buffered pltpu.make_async_copy) to drop these two HBM
    # materializations (~2x feature traffic); for small rows the per-row DMA
    # descriptor issue rate (~1/cycle via the vector-misc slot) dominates.
    f1 = feats_p[idx1_p]
    f2 = feats_p[idx2_p]

    feat_spec = pl.BlockSpec((tb, D), lambda i: (i, 0))
    lab_spec = pl.BlockSpec((tb, 2), lambda i: (i, 0))
    out_spec = pl.BlockSpec((tb, 1), lambda i: (i, 0))

    per_row_losses = pl.pallas_call(
        _adaptive_triplet_kernel,
        out_shape=jax.ShapeDtypeStruct((b_pad, 1), jnp.float32),
        grid_spec=pltpu.PrefetchScalarGridSpec(
            num_scalar_prefetch=0,
            grid=(num_tiles,),
            in_specs=[feat_spec, feat_spec, feat_spec, lab_spec],
            out_specs=out_spec,
        ),
        compiler_params=pltpu.CompilerParams(
            dimension_semantics=("parallel",),   # independent tiles -> megacore OK
            vmem_limit_bytes=vmem_limit,
        ),
    )(feats_p, f1, f2, lab_p)

    return jnp.sum(per_row_losses)


def _reference(minibatch_features, label, idx1, idx2):
    """Pure-JAX re-implementation of the PyTorch loops, for verification."""
    f = jnp.asarray(minibatch_features, jnp.float32)
    lab = jnp.asarray(label, jnp.float32)
    total = 0.0
    for i in range(f.shape[0]):
        a, la = f[i], lab[i]
        t1, t2 = f[idx1[i]], f[idx2[i]]
        lt1, lt2 = lab[idx1[i]], lab[idx2[i]]
        ld1 = jnp.sum(jnp.abs(la - lt1))
        ld2 = jnp.sum(jnp.abs(la - lt2))
        near, far, nl, fl = jax.tree.map(
            lambda x, y: jnp.where(ld1 >= ld2, x, y), (t2, t1, lt2, lt1), (t1, t2, lt1, lt2)
        )
        dp = jnp.sum((a - near) ** 2)
        dn = jnp.sum((a - far) ** 2)
        latp = jnp.sum((la - nl) ** 2)
        latn = jnp.sum((la - fl) ** 2)
        loss = jnp.maximum(dp - dn + MARGIN * (latn - latp), 0.0)
        total = total + loss
    return total


if __name__ == "__main__":
    B, D, L = 8, 32, 4

    key = jax.random.PRNGKey(0)
    kf, kl = jax.random.split(key)
    minibatch_features = jax.random.normal(kf, (B, D), dtype=jnp.float32)
    label = jax.random.normal(kl, (B, L), dtype=jnp.float32)

    # Deterministic replication of the module's host-side random.sample loop.
    random.seed(0)
    idx1_list, idx2_list = [], []
    for i in range(B):
        a, b = random.sample(range(0, B), 2)
        while a == i or b == i:
            a, b = random.sample(range(0, B), 2)
        idx1_list.append(a)
        idx2_list.append(b)
    idx1 = jnp.array(idx1_list, dtype=jnp.int32)
    idx2 = jnp.array(idx2_list, dtype=jnp.int32)

    out = adaptive_triplet_loss(minibatch_features, label, idx1, idx2)
    out = jax.block_until_ready(out)

    ref = _reference(minibatch_features, label, idx1_list, idx2_list)
    assert jnp.allclose(out, ref, rtol=1e-5, atol=1e-5), (out, ref)

    print("KERNEL_OK")
</pallas_src>

<mosaic_0001>
module attributes {stable_mosaic.version = 11 : i64} {
  func.func @_adaptive_triplet_kernel(%arg0: i32, %arg1: memref<8x32xf32, #tpu.memory_space<vmem>>, %arg2: memref<8x32xf32, #tpu.memory_space<vmem>>, %arg3: memref<8x32xf32, #tpu.memory_space<vmem>>, %arg4: memref<8x2xf32, #tpu.memory_space<vmem>>, %arg5: memref<8x1xf32, #tpu.memory_space<vmem>>) attributes {dimension_semantics = [#tpu.dimension_semantics<parallel>], iteration_bounds = array<i64: 1>, scalar_prefetch = 0 : i64, scratch_operands = 0 : i64, tpu.core_type = #tpu.core_type<tc>, window_params = [{transform_indices = @transform_0, window_bounds = array<i64: 8, 32>}, {transform_indices = @transform_1, window_bounds = array<i64: 8, 32>}, {transform_indices = @transform_2, window_bounds = array<i64: 8, 32>}, {transform_indices = @transform_3, window_bounds = array<i64: 8, 2>}, {transform_indices = @transform_4, window_bounds = array<i64: 8, 1>}]} {
    %c0 = arith.constant 0 : index
    %c0_0 = arith.constant 0 : index
    %0 = vector.load %arg1[%c0, %c0_0] : memref<8x32xf32, #tpu.memory_space<vmem>>, vector<8x32xf32>
    %c0_1 = arith.constant 0 : index
    %c0_2 = arith.constant 0 : index
    %1 = vector.load %arg2[%c0_1, %c0_2] : memref<8x32xf32, #tpu.memory_space<vmem>>, vector<8x32xf32>
    %c0_3 = arith.constant 0 : index
    %c0_4 = arith.constant 0 : index
    %2 = vector.load %arg3[%c0_3, %c0_4] : memref<8x32xf32, #tpu.memory_space<vmem>>, vector<8x32xf32>
    %3 = arith.subf %0, %1 : vector<8x32xf32>
    %4 = arith.subf %0, %2 : vector<8x32xf32>
    %5 = arith.mulf %3, %3 : vector<8x32xf32>
    %cst = arith.constant dense<0.000000e+00> : vector<8xf32>
    %6 = vector.multi_reduction <add>, %5, %cst [1] : vector<8x32xf32> to vector<8xf32>
    %7 = vector.shape_cast %6 : vector<8xf32> to vector<8x1xf32>
    %8 = arith.mulf %4, %4 : vector<8x32xf32>
    %cst_5 = arith.constant dense<0.000000e+00> : vector<8xf32>
    %9 = vector.multi_reduction <add>, %8, %cst_5 [1] : vector<8x32xf32> to vector<8xf32>
    %10 = vector.shape_cast %9 : vector<8xf32> to vector<8x1xf32>
    %c0_6 = arith.constant 0 : index
    %c0_7 = arith.constant 0 : index
    %11 = vector.load %arg4[%c0_6, %c0_7] : memref<8x2xf32, #tpu.memory_space<vmem>>, vector<8x1xf32>
    %c0_8 = arith.constant 0 : index
    %c1 = arith.constant 1 : index
    %12 = vector.load %arg4[%c0_8, %c1] : memref<8x2xf32, #tpu.memory_space<vmem>>, vector<8x1xf32>
    %13 = arith.subf %10, %7 : vector<8x1xf32>
    %14 = arith.mulf %11, %13 : vector<8x1xf32>
    %15 = arith.addf %14, %12 : vector<8x1xf32>
    %cst_9 = arith.constant 0.000000e+00 : f32
    %16 = vector.broadcast %cst_9 : f32 to vector<8x1xf32>
    %17 = arith.maximumf %15, %16 : vector<8x1xf32>
    %c0_10 = arith.constant 0 : index
    %c0_11 = arith.constant 0 : index
    %18 = vector.load %arg5[%c0_10, %c0_11] : memref<8x1xf32, #tpu.memory_space<vmem>>, vector<8x1xf32>
    tpu.vector_store %arg5[%c0_10, %c0_11], %17 {strides = array<i32>} : memref<8x1xf32, #tpu.memory_space<vmem>>, vector<8x1xf32>,
    return
  }
  func.func @transform_0(%arg0: i32) -> (i32, i32) {
    %c0_i32 = arith.constant 0 : i32
    %c0_i32_0 = arith.constant 0 : i32
    return %arg0, %c0_i32 : i32, i32
  }
  func.func @transform_1(%arg0: i32) -> (i32, i32) {
    %c0_i32 = arith.constant 0 : i32
    %c0_i32_0 = arith.constant 0 : i32
    return %arg0, %c0_i32 : i32, i32
  }
  func.func @transform_2(%arg0: i32) -> (i32, i32) {
    %c0_i32 = arith.constant 0 : i32
    %c0_i32_0 = arith.constant 0 : i32
    return %arg0, %c0_i32 : i32, i32
  }
  func.func @transform_3(%arg0: i32) -> (i32, i32) {
    %c0_i32 = arith.constant 0 : i32
    %c0_i32_0 = arith.constant 0 : i32
    return %arg0, %c0_i32 : i32, i32
  }
  func.func @transform_4(%arg0: i32) -> (i32, i32) {
    %c0_i32 = arith.constant 0 : i32
    %c0_i32_0 = arith.constant 0 : i32
    return %arg0, %c0_i32 : i32, i32
  }
}

</mosaic_0001>

<llo_original>
// kernel: tpu_custom_call.1
$region0: #{tpu_custom_call.1}
  #allocation0 [shape = 'u32[]', space=smem, size = 0x4, offset = 0x4, fixed_abs, tag = 'smem constant byte address 0x4 - core index']
  #allocation1 [shape = 'u32[144,128]{1,0:T(1,128)}', space=vmem, size = 0x12000, scoped, tag = 'internal scratch']
  %s0 = inlined_call_operand.vmem [shape: f32[8,32], index: 0, kind: input, shape index: {}]
  %s1 = inlined_call_operand.hbm [shape: f32[8,32], index: 1, kind: input, shape index: {}]
  %s2 = inlined_call_operand.hbm [shape: f32[8,32], index: 2, kind: input, shape index: {}]
  %s3 = inlined_call_operand.vmem [shape: f32[8,2], index: 3, kind: input, shape index: {}]
  %s4 = inlined_call_operand.vmem [shape: f32[8,1], index: 4, kind: output, shape index: {}]
  %s5 = sld [smem:[#allocation0]]
  $region34: #{tpu_custom_call.1} parent=0
    _
  %s7 = ssub.s32 1, %s5
  %s8 = scalar_select 0, %s7, %s5
  $region1: #{tpu_custom_call.1} parent=0
    #allocation2 [shape = 'u8[4096]{0}', space=vmem, size = 0x1000, scoped, tag = 'input window, operand 1, single buffered']
    #allocation3 [shape = 's32[1]{0}', space=sflag, size = 0x4, scoped, tag = 'scoped memory for tpu_custom_call.1']
    #allocation4 [shape = 'u8[4096]{0}', space=vmem, size = 0x1000, scoped, tag = 'input window, operand 2, single buffered']
    #allocation5 [shape = 's32[1]{0}', space=sflag, size = 0x4, scoped, tag = 'scoped memory for tpu_custom_call.1']
    %9 = vsyncpa [#allocation3], 0
    %10 = vsyncpa [#allocation5], 0
    // Predicated region
    $region2: #{tpu_custom_call.1} parent=1 // pred_check
      _
    $region3: #{tpu_custom_call.1} parent=1 // pred_check_branch
      %12 = sbr.rel (0) target = $region5
    $region4: #{tpu_custom_call.1} parent=1 // pred_region
      _
    $region5: #{tpu_custom_call.1} parent=1 // pred_fallthru
      _
    // Predicated region
    $region6: #{tpu_custom_call.1} parent=1 // pred_check
      _
    $region7: #{tpu_custom_call.1} parent=1 // pred_check_branch
      %14 = sbr.rel (0) target = $region9
    $region8: #{tpu_custom_call.1} parent=1 // pred_region
      %s16 = ssub.s32 128, 128
      %17 = vsyncadd [#allocation3], %s16
      %s19 = sshll.u32 [#allocation2], 4
      %s20 = int_to_ptr.vmem [resolvable:$true] %s19
      %22 = dma.hbm_to_vmem [thread:$0]  %s1, 128, %s20, [#allocation3]
    $region9: #{tpu_custom_call.1} parent=1 // pred_fallthru
      _
    // Predicated region
    $region10: #{tpu_custom_call.1} parent=1 // pred_check
      _
    $region11: #{tpu_custom_call.1} parent=1 // pred_check_branch
      %24 = sbr.rel (0) target = $region13
    $region12: #{tpu_custom_call.1} parent=1 // pred_region
      %s26 = ssub.s32 128, 128
      %27 = vsyncadd [#allocation5], %s26
      %s29 = sshll.u32 [#allocation4], 4
      %s30 = int_to_ptr.vmem [resolvable:$true] %s29
      %32 = dma.hbm_to_vmem [thread:$0]  %s2, 128, %s30, [#allocation5]
    $region13: #{tpu_custom_call.1} parent=1 // pred_fallthru
      _
    // Predicated region
    $region14: #{tpu_custom_call.1} parent=1 // pred_check
      _
    $region15: #{tpu_custom_call.1} parent=1 // pred_check_branch
      %34 = sbr.rel (0) target = $region17
    $region16: #{tpu_custom_call.1} parent=1 // pred_region
      _
    $region17: #{tpu_custom_call.1} parent=1 // pred_fallthru
      _
    // Predicated region
    $region18: #{tpu_custom_call.1} parent=1 // pred_check
      _
    $region19: #{tpu_custom_call.1} parent=1 // pred_check_branch
      %36 = sbr.rel (0) target = $region21
    $region20: #{tpu_custom_call.1} parent=1 // pred_region
      %37 = dma.done [#allocation3], 128
    $region21: #{tpu_custom_call.1} parent=1 // pred_fallthru
      _
    // Predicated region
    $region22: #{tpu_custom_call.1} parent=1 // pred_check
      _
    $region23: #{tpu_custom_call.1} parent=1 // pred_check_branch
      %39 = sbr.rel (0) target = $region25
    $region24: #{tpu_custom_call.1} parent=1 // pred_region
      %40 = dma.done [#allocation5], 128
    $region25: #{tpu_custom_call.1} parent=1 // pred_fallthru
      _
    %v41 = vld [vmem:[%s0] sm:$0xff]
    %v42 = vld [vmem:[#allocation2] sm:$0xff]
    %v43 = vld [vmem:[#allocation4] sm:$0xff]
    %v44 = vsub.f32 %v41, %v42
    %v45 = vsub.f32 %v41, %v43
    %v46 = vmul.f32 %v44, %v44
    %vm47 = vcmask 261120
    %v48 = vsel %vm47, %v46, 0.0
    %49 = vadd.xlane.f32.xlu0 %v48
    %v50 = vpop.xlane.xlu0 %49
    %v51 = vmul.f32 %v45, %v45
    %v52 = vsel %vm47, %v51, 0.0
    %53 = vadd.xlane.f32.xlu0 %v52
    %v54 = vpop.xlane.xlu0 %53
    %v55 = vld [vmem:[%s3] sm:$0xff]
    %v56 = vsub.f32 %v54, %v50
    %v57 = vmul.f32 %v55, %v56
    %59 = vrot.lane.b32.xlu0 %v55, 127
    %v60 = vpop.permute.xlu0 %59
    %v62 = vadd.f32 %v57, %v60
    %v63 = vmax.f32 %v62, 0.0
    %vm64 = vcmask 7168
    %65 = vst.msk [vmem:[%s4] sm:$0xff] %vm64, %v63
    // Predicated region
    $region26: #{tpu_custom_call.1} parent=1 // pred_check
      _
    $region27: #{tpu_custom_call.1} parent=1 // pred_check_branch
      %67 = sbr.rel (0) target = $region29
    $region28: #{tpu_custom_call.1} parent=1 // pred_region
      _
    $region29: #{tpu_custom_call.1} parent=1 // pred_fallthru
      _
    // Predicated region
    $region30: #{tpu_custom_call.1} parent=1 // pred_check
      _
    $region31: #{tpu_custom_call.1} parent=1 // pred_check_branch
      %69 = sbr.rel (0) target = $region33
    $region32: #{tpu_custom_call.1} parent=1 // pred_region
      _
    $region33: #{tpu_custom_call.1} parent=1 // pred_fallthru
      _
    %70 = vsyncpa [#allocation3], 1
    %71 = vsyncpa [#allocation5], 1

</llo_original>
